<compile_context>
chip_gen: v5e
topology: v5e:2x2
jax: 0.10.0
libtpu: 0.0.40
codegen_flags: <defaults>
</compile_context>

<pallas_src>
import jax
import jax.numpy as jnp
from jax import lax
from jax.experimental import pallas as pl
from jax.experimental.pallas import tpu as pltpu

_LANE = 128
_SUBLANE = 8


def _round_up(x, m):
    return (x + m - 1) // m * m


def _tpu_defaults():
    """Per-generation defaults: (tile_rows, n_splits)."""
    try:
        kind = jax.devices()[0].device_kind.lower()
    except Exception:
        kind = ""
    is_v7 = "v7" in kind
    is_v5e = ("v5e" in kind) or ("v5 lite" in kind) or ("v5litepod" in kind)
    # v7x has 2 TensorCores/chip -> 2-way "parallel" leading split; on
    # single-TC v5e/v6e a second split is just a serial re-run (skip it).
    n_splits = 2 if is_v7 else 1
    # HBM-bound: move >=2-4 MiB per input per grid step.  Cap at 4096 rows on
    # bandwidth-starved v5e (smaller scoped VMEM, smaller big-tile win).
    tile_rows = 4096 if is_v5e else 8192
    return tile_rows, n_splits


def _make_kernel(tile_rows, blocks_per_split, rows, need_mask):
    def kernel(pred_ref, target_ref, out_ref, acc_ref):
        i = pl.program_id(1)

        @pl.when(i == 0)
        def _():
            acc_ref[...] = jnp.zeros_like(acc_ref)

        # Cast in-kernel so bf16/f16 inputs are read at half the HBM bytes.
        diff = (target_ref[...].astype(jnp.float32)
                - pred_ref[...].astype(jnp.float32) * 255.0)
        sq = diff * diff

        def accumulate(vals):
            # Fold the block into a single (8,128) vreg: pure VPU adds, no
            # per-vreg load/store of a big accumulator (saves the vst slot —
            # matters most on v5e) and frees VMEM for bigger input tiles.
            acc_ref[...] += vals.reshape(
                tile_rows // _SUBLANE, _SUBLANE, _LANE).sum(axis=0)

        if need_mask:
            c = pl.program_id(0)
            b = c * blocks_per_split + i          # unclamped block id
            base_row = b * tile_rows
            is_full = (base_row + tile_rows) <= rows

            @pl.when(is_full)
            def _():
                accumulate(sq)                    # common path: no mask ops

            @pl.when(jnp.logical_not(is_full))
            def _():
                # Ragged last block or phantom clamped block of a split:
                # zero everything past the true row count.
                row_ids = base_row + lax.broadcasted_iota(
                    jnp.int32, (tile_rows, _LANE), 0)
                accumulate(jnp.where(row_ids < rows, sq, 0.0))
        else:
            accumulate(sq)

        @pl.when(i == pl.num_programs(1) - 1)
        def _():
            # Single tiny cross-lane/sublane reduction per core split.
            out_ref[...] = jnp.sum(acc_ref[...], axis=(0, 1), keepdims=True)

    return kernel


def bc_loss(pred, target, *, tile_rows=None, n_splits=None):
    """Pallas implementation of bc.forward: mean((target - 255*pred)**2)."""
    assert pred.ndim == target.ndim, "inconsistent dimensions"
    assert pred.shape == target.shape
    # TODO(synk): valid_mask=(target>0) in the PyTorch module is computed but
    # never applied to the loss; we intentionally match that behaviour.

    n_elem = pred.size
    default_tile, default_splits = _tpu_defaults()
    if tile_rows is None:
        tile_rows = default_tile
    if n_splits is None:
        n_splits = default_splits

    if not jnp.issubdtype(pred.dtype, jnp.floating):
        pred = pred.astype(jnp.float32)
    if not jnp.issubdtype(target.dtype, jnp.floating):
        target = target.astype(jnp.float32)

    pred_f = pred.reshape(-1)       # free reshape (contiguous)
    target_f = target.reshape(-1)

    # Rare tail (< 128 elements when n_elem % 128 != 0): reduce wrapper-side
    # instead of jnp.pad-ing full copies of both inputs through HBM.
    rem = n_elem % _LANE
    main = n_elem - rem
    if rem:
        tp = pred_f[main:].astype(jnp.float32)
        tt = target_f[main:].astype(jnp.float32)
        td = tt - tp * 255.0
        tail_sum = jnp.sum(td * td)
    else:
        tail_sum = jnp.float32(0.0)

    rows = main // _LANE
    if rows == 0:
        return tail_sum / jnp.float32(n_elem)

    pred2d = pred_f[:main].reshape(rows, _LANE)
    target2d = target_f[:main].reshape(rows, _LANE)

    # Block row count: multiple of 8 (sublane), no bigger than needed.
    tile_rows = max(_SUBLANE, min(tile_rows, _round_up(rows, _SUBLANE)))
    tile_rows = _round_up(tile_rows, _SUBLANE)

    total_blocks = pl.cdiv(rows, tile_rows)
    n_splits = n_splits if total_blocks >= n_splits else 1
    blocks_per_split = pl.cdiv(total_blocks, n_splits)

    # Mask needed if the last block is ragged or a split has phantom blocks.
    need_mask = (rows % tile_rows != 0) or (total_blocks % n_splits != 0)

    def in_map(c, i):
        # Clamp so phantom iterations of the last split never DMA OOB; their
        # contribution is zeroed by the in-kernel row mask.
        b = c * blocks_per_split + i
        return (jnp.minimum(b, total_blocks - 1), 0)

    kernel = _make_kernel(tile_rows, blocks_per_split, rows, need_mask)

    itemsize = pred2d.dtype.itemsize + target2d.dtype.itemsize
    # 2 pipeline buffers per input (+ tiny acc/output) — request VMEM
    # explicitly so the big tiles compile on v5e's 16 MiB default scope too;
    # 2x headroom covers compiler-materialized temporaries.
    vmem_need = 2 * tile_rows * _LANE * itemsize + _SUBLANE * _LANE * 4 + (1 << 16)
    vmem_limit = int(min(max(2 * vmem_need + (4 << 20), 16 << 20), 56 << 20))

    cost = pl.CostEstimate(
        flops=4 * rows * _LANE,
        transcendentals=0,
        bytes_accessed=rows * _LANE * itemsize + 4 * n_splits,
    )

    # TODO(synk): on v7x, if the trace shows the leading "parallel" axis is not
    # sharded across both TensorCores, switch it to pltpu.CORE_PARALLEL and/or
    # add pipeline_mode=pl.Buffered(3) on the input specs.
    partials = pl.pallas_call(
        kernel,
        out_shape=jax.ShapeDtypeStruct((n_splits, 1), jnp.float32),
        grid_spec=pltpu.PrefetchScalarGridSpec(
            num_scalar_prefetch=0,
            grid=(n_splits, blocks_per_split),
            in_specs=[
                pl.BlockSpec((tile_rows, _LANE), in_map),
                pl.BlockSpec((tile_rows, _LANE), in_map),
            ],
            out_specs=pl.BlockSpec((1, 1), lambda c, i: (c, 0)),
            scratch_shapes=[pltpu.VMEM((_SUBLANE, _LANE), jnp.float32)],
        ),
        compiler_params=pltpu.CompilerParams(
            dimension_semantics=("parallel", "arbitrary"),
            vmem_limit_bytes=vmem_limit,
        ),
        cost_estimate=cost,
    )(pred2d, target2d)

    return (jnp.sum(partials) + tail_sum) / jnp.float32(n_elem)


if __name__ == "__main__":
    key = jax.random.PRNGKey(0)
    k_pred, k_target = jax.random.split(key)

    # Small NCHW-like shapes consistent with an image/depth loss.
    shape = (2, 4, 16, 16)
    pred = jax.random.uniform(k_pred, shape, dtype=jnp.float32)              # ~[0,1]
    target = jax.random.uniform(k_target, shape, dtype=jnp.float32) * 255.0  # ~[0,255]

    loss = jax.block_until_ready(bc_loss(pred, target))
    ref = jnp.mean((target - pred * 255.0) ** 2)
    assert jnp.allclose(loss, ref, rtol=1e-5, atol=1e-3), (loss, ref)

    # Multi-block, ragged last block, explicit 2-way split (masked path).
    big_shape = (3, 8, 37, 128)
    bp = jax.random.uniform(k_pred, big_shape, dtype=jnp.float32)
    bt = jax.random.uniform(k_target, big_shape, dtype=jnp.float32) * 255.0
    big_loss = jax.block_until_ready(bc_loss(bp, bt, tile_rows=512, n_splits=2))
    big_ref = jnp.mean((bt - bp * 255.0) ** 2)
    assert jnp.allclose(big_loss, big_ref, rtol=1e-5, atol=1e-3), (big_loss, big_ref)

    # n_elem % 128 != 0 -> wrapper-side tail reduction path (no full-array pad).
    odd_shape = (8, 129)
    op = jax.random.uniform(k_pred, odd_shape, dtype=jnp.float32)
    ot = jax.random.uniform(k_target, odd_shape, dtype=jnp.float32) * 255.0
    odd_loss = jax.block_until_ready(bc_loss(op, ot))
    odd_ref = jnp.mean((ot - op * 255.0) ** 2)
    assert jnp.allclose(odd_loss, odd_ref, rtol=1e-5, atol=1e-3), (odd_loss, odd_ref)

    print("KERNEL_OK")
</pallas_src>

<mosaic_0001>
module attributes {stable_mosaic.version = 11 : i64} {
  func.func @kernel(%arg0: i32, %arg1: i32, %arg2: memref<16x128xf32, #tpu.memory_space<vmem>>, %arg3: memref<16x128xf32, #tpu.memory_space<vmem>>, %arg4: memref<1x1xf32, #tpu.memory_space<vmem>>, %arg5: memref<8x128xf32, #tpu.memory_space<vmem>>) attributes {dimension_semantics = [#tpu.dimension_semantics<parallel>, #tpu.dimension_semantics<arbitrary>], iteration_bounds = array<i64: 1, 1>, scalar_prefetch = 0 : i64, scratch_operands = 1 : i64, tpu.core_type = #tpu.core_type<tc>, window_params = [{transform_indices = @transform_0, window_bounds = array<i64: 16, 128>}, {transform_indices = @transform_1, window_bounds = array<i64: 16, 128>}, {transform_indices = @transform_2, window_bounds = array<i64: 1, 1>}]} {
    %c0_i32 = arith.constant 0 : i32
    %0 = arith.cmpi eq, %arg1, %c0_i32 : i32
    %1 = arith.extui %0 : i1 to i32
    %c0_i32_0 = arith.constant 0 : i32
    %2 = arith.cmpi ne, %1, %c0_i32_0 : i32
    scf.if %2 {
      %cst_11 = arith.constant 0.000000e+00 : f32
      %17 = vector.broadcast %cst_11 : f32 to vector<8x128xf32>
      %c0_12 = arith.constant 0 : index
      %c0_13 = arith.constant 0 : index
      %18 = vector.load %arg5[%c0_12, %c0_13] : memref<8x128xf32, #tpu.memory_space<vmem>>, vector<8x128xf32>
      tpu.vector_store %arg5[%c0_12, %c0_13], %17 {strides = array<i32>} : memref<8x128xf32, #tpu.memory_space<vmem>>, vector<8x128xf32>,
    } else {
    }
    %c0 = arith.constant 0 : index
    %c0_1 = arith.constant 0 : index
    %3 = vector.load %arg3[%c0, %c0_1] : memref<16x128xf32, #tpu.memory_space<vmem>>, vector<16x128xf32>
    %c0_2 = arith.constant 0 : index
    %c0_3 = arith.constant 0 : index
    %4 = vector.load %arg2[%c0_2, %c0_3] : memref<16x128xf32, #tpu.memory_space<vmem>>, vector<16x128xf32>
    %cst = arith.constant 2.550000e+02 : f32
    %5 = vector.broadcast %cst : f32 to vector<16x128xf32>
    %6 = arith.mulf %4, %5 : vector<16x128xf32>
    %7 = arith.subf %3, %6 : vector<16x128xf32>
    %8 = arith.mulf %7, %7 : vector<16x128xf32>
    %c0_4 = arith.constant 0 : index
    %c0_5 = arith.constant 0 : index
    %9 = vector.load %arg5[%c0_4, %c0_5] : memref<8x128xf32, #tpu.memory_space<vmem>>, vector<8x128xf32>
    %10 = vector.shape_cast %8 : vector<16x128xf32> to vector<2x8x128xf32>
    %cst_6 = arith.constant dense<0.000000e+00> : vector<8x128xf32>
    %11 = vector.multi_reduction <add>, %10, %cst_6 [0] : vector<2x8x128xf32> to vector<8x128xf32>
    %12 = arith.addf %9, %11 : vector<8x128xf32>
    %c0_7 = arith.constant 0 : index
    %c0_8 = arith.constant 0 : index
    %13 = vector.load %arg5[%c0_7, %c0_8] : memref<8x128xf32, #tpu.memory_space<vmem>>, vector<8x128xf32>
    tpu.vector_store %arg5[%c0_7, %c0_8], %12 {strides = array<i32>} : memref<8x128xf32, #tpu.memory_space<vmem>>, vector<8x128xf32>,
    %c0_i32_9 = arith.constant 0 : i32
    %14 = arith.cmpi eq, %arg1, %c0_i32_9 : i32
    %15 = arith.extui %14 : i1 to i32
    %c0_i32_10 = arith.constant 0 : i32
    %16 = arith.cmpi ne, %15, %c0_i32_10 : i32
    scf.if %16 {
      %c0_11 = arith.constant 0 : index
      %c0_12 = arith.constant 0 : index
      %17 = vector.load %arg5[%c0_11, %c0_12] : memref<8x128xf32, #tpu.memory_space<vmem>>, vector<8x128xf32>
      %18 = vector.shape_cast %17 : vector<8x128xf32> to vector<1x8x128xf32>
      %cst_13 = arith.constant dense<0.000000e+00> : vector<1xf32>
      %19 = vector.multi_reduction <add>, %18, %cst_13 [1, 2] : vector<1x8x128xf32> to vector<1xf32>
      %20 = vector.shape_cast %19 : vector<1xf32> to vector<1x1x1xf32>
      %21 = vector.extract %20[0, 0, 0] : f32 from vector<1x1x1xf32>
      %22 = vector.broadcast %21 : f32 to vector<1x1xf32>
      %c0_14 = arith.constant 0 : index
      %c0_15 = arith.constant 0 : index
      %23 = vector.load %arg4[%c0_14, %c0_15] : memref<1x1xf32, #tpu.memory_space<vmem>>, vector<1x1xf32>
      tpu.vector_store %arg4[%c0_14, %c0_15], %22 {strides = array<i32>} : memref<1x1xf32, #tpu.memory_space<vmem>>, vector<1x1xf32>,
    } else {
    }
    return
  }
  func.func @transform_0(%arg0: i32, %arg1: i32) -> (i32, i32) {
    %c1_i32 = arith.constant 1 : i32
    %0 = arith.muli %arg0, %c1_i32 : i32
    %1 = arith.addi %0, %arg1 : i32
    %c0_i32 = arith.constant 0 : i32
    %2 = arith.minsi %1, %c0_i32 : i32
    %c0_i32_0 = arith.constant 0 : i32
    %c0_i32_1 = arith.constant 0 : i32
    return %2, %c0_i32_0 : i32, i32
  }
  func.func @transform_1(%arg0: i32, %arg1: i32) -> (i32, i32) {
    %c1_i32 = arith.constant 1 : i32
    %0 = arith.muli %arg0, %c1_i32 : i32
    %1 = arith.addi %0, %arg1 : i32
    %c0_i32 = arith.constant 0 : i32
    %2 = arith.minsi %1, %c0_i32 : i32
    %c0_i32_0 = arith.constant 0 : i32
    %c0_i32_1 = arith.constant 0 : i32
    return %2, %c0_i32_0 : i32, i32
  }
  func.func @transform_2(%arg0: i32, %arg1: i32) -> (i32, i32) {
    %c0_i32 = arith.constant 0 : i32
    %c0_i32_0 = arith.constant 0 : i32
    return %arg0, %c0_i32 : i32, i32
  }
}

</mosaic_0001>

<llo_original>
// kernel: tpu_custom_call.1
$region0: #{tpu_custom_call.1}
  #allocation0 [shape = 'u32[]', space=smem, size = 0x4, offset = 0x4, fixed_abs, tag = 'smem constant byte address 0x4 - core index']
  #allocation1 [shape = 'u32[72,128]{1,0:T(1,128)}', space=vmem, size = 0x9000, scoped, tag = 'internal scratch']
  #allocation2 [shape = 'f32[8,128]{1,0:T(8,128)}', space=vmem, size = 0x1000, scoped, tag = 'scratch operand']
  %s0 = inlined_call_operand.hbm [shape: f32[16,128], index: 0, kind: input, shape index: {}]
  %s1 = inlined_call_operand.hbm [shape: f32[16,128], index: 1, kind: input, shape index: {}]
  %s2 = inlined_call_operand.hbm [shape: f32[1,1], index: 2, kind: output, shape index: {}]
  %s3 = sld [smem:[#allocation0]]
  $region34: #{tpu_custom_call.1} parent=0
    _
  %s5 = ssub.s32 1, %s3
  %s6 = scalar_select 0, %s5, %s3
  $region1: #{tpu_custom_call.1} parent=0
    #allocation3 [shape = 'u8[8192]{0}', space=vmem, size = 0x2000, scoped, tag = 'input window, operand 0, single buffered']
    #allocation4 [shape = 's32[1]{0}', space=sflag, size = 0x4, scoped, tag = 'scoped memory for tpu_custom_call.1']
    #allocation5 [shape = 's32[1]{0}', space=sflag, size = 0x4, scoped, tag = 'scoped memory for tpu_custom_call.1']
    #allocation6 [shape = 'u8[8192]{0}', space=vmem, size = 0x2000, scoped, tag = 'input window, operand 1, single buffered']
    #allocation7 [shape = 's32[1]{0}', space=sflag, size = 0x4, scoped, tag = 'scoped memory for tpu_custom_call.1']
    #allocation8 [shape = 'u8[512]{0}', space=vmem, size = 0x400, scoped, tag = 'output window, operand 0, single buffered']
    %7 = vsyncpa [#allocation4], 0
    %8 = vsyncpa [#allocation7], 0
    %9 = vsyncpa [#allocation5], 0
    // Predicated region
    $region2: #{tpu_custom_call.1} parent=1 // pred_check
      _
    $region3: #{tpu_custom_call.1} parent=1 // pred_check_branch
      %11 = sbr.rel (0) target = $region5
    $region4: #{tpu_custom_call.1} parent=1 // pred_region
      %s12 = sadd.s32 0, 0
      %p13 = scmp.lt.s32.totalorder %s12, 0
      %s14 = scalar_select %p13, %s12, 0
      %s15 = smul.u32 2, %s14
      %17 = vsyncadd [#allocation4], 0
      %s18 = smul.addr %s15, 8
      %s19 = scalar_lea.hbm %s0, %s18
      %s20 = sshll.u32 %s19, 4
      %s21 = int_to_ptr.hbm [resolvable:$true] %s20
      %s22 = sshll.u32 [#allocation3], 4
      %s23 = int_to_ptr.vmem [resolvable:$true] %s22
      %28 = dma.hbm_to_vmem [thread:$0]  %s21, 256, %s23, [#allocation4], 128, 128, 8
    $region5: #{tpu_custom_call.1} parent=1 // pred_fallthru
      _
    // Predicated region
    $region6: #{tpu_custom_call.1} parent=1 // pred_check
      _
    $region7: #{tpu_custom_call.1} parent=1 // pred_check_branch
      %30 = sbr.rel (0) target = $region9
    $region8: #{tpu_custom_call.1} parent=1 // pred_region
      %s31 = sadd.s32 0, 0
      %p32 = scmp.lt.s32.totalorder %s31, 0
      %s33 = scalar_select %p32, %s31, 0
      %s34 = smul.u32 2, %s33
      %36 = vsyncadd [#allocation7], 0
      %s37 = smul.addr %s34, 8
      %s38 = scalar_lea.hbm %s1, %s37
      %s39 = sshll.u32 %s38, 4
      %s40 = int_to_ptr.hbm [resolvable:$true] %s39
      %s41 = sshll.u32 [#allocation6], 4
      %s42 = int_to_ptr.vmem [resolvable:$true] %s41
      %47 = dma.hbm_to_vmem [thread:$0]  %s40, 256, %s42, [#allocation7], 128, 128, 8
    $region9: #{tpu_custom_call.1} parent=1 // pred_fallthru
      _
    // Predicated region
    $region10: #{tpu_custom_call.1} parent=1 // pred_check
      _
    $region11: #{tpu_custom_call.1} parent=1 // pred_check_branch
      %49 = sbr.rel (0) target = $region13
    $region12: #{tpu_custom_call.1} parent=1 // pred_region
      %51 = dma.done [#allocation4], 256
    $region13: #{tpu_custom_call.1} parent=1 // pred_fallthru
      _
    // Predicated region
    $region14: #{tpu_custom_call.1} parent=1 // pred_check
      _
    $region15: #{tpu_custom_call.1} parent=1 // pred_check_branch
      %53 = sbr.rel (0) target = $region17
    $region16: #{tpu_custom_call.1} parent=1 // pred_region
      %55 = dma.done [#allocation7], 256
    $region17: #{tpu_custom_call.1} parent=1 // pred_fallthru
      _
    %s56 = sadd.s32 0, 0
    %p57 = scmp.lt.s32.totalorder %s56, 0
    %s58 = scalar_select %p57, %s56, 0
    %s59 = smul.u32 2, %s58
    %s60 = sadd.s32 0, 0
    %p61 = scmp.lt.s32.totalorder %s60, 0
    %s62 = scalar_select %p61, %s60, 0
    %s63 = smul.u32 2, %s62
    %p64 = scmp.eq.s32.totalorder 0, 0
    // Predicated region
    $region18: #{tpu_custom_call.1} parent=1 // pred_check
      %p65 = pneg %p64
    $region19: #{tpu_custom_call.1} parent=1 // pred_check_branch
      %67 = sbr.rel (%p65) target = $region21
    $region20: #{tpu_custom_call.1} parent=1 // pred_region
      %68 = vst [vmem:[#allocation2] sm:$0xff] 0.0
    $region21: #{tpu_custom_call.1} parent=1 // pred_fallthru
      _
    %v69 = vld [vmem:[#allocation6] sm:$0xff]
    %v70 = vld [vmem:[#allocation6 + $0x8] sm:$0xff]
    %v71 = vld [vmem:[#allocation3] sm:$0xff]
    %v72 = vld [vmem:[#allocation3 + $0x8] sm:$0xff]
    %v73 = vmul.f32 %v71, 255.0
    %v74 = vmul.f32 %v72, 255.0
    %v75 = vsub.f32 %v69, %v73
    %v76 = vsub.f32 %v70, %v74
    %v77 = vmul.f32 %v75, %v75
    %v78 = vmul.f32 %v76, %v76
    %v79 = vld [vmem:[#allocation2] sm:$0xff]
    %v80 = vadd.f32 %v77, %v78
    %v81 = vadd.f32 %v79, %v80
    %82 = vst [vmem:[#allocation2] sm:$0xff] %v81
    // Predicated region
    $region22: #{tpu_custom_call.1} parent=1 // pred_check
      %p83 = pneg %p64
    $region23: #{tpu_custom_call.1} parent=1 // pred_check_branch
      %85 = sbr.rel (%p83) target = $region25
    $region24: #{tpu_custom_call.1} parent=1 // pred_region
      %v86 = vld [vmem:[#allocation2] sm:$0xff]
      %87 = vadd.xlane.f32.xlu0 %v86
      %v88 = vpop.xlane.xlu0 %87
      %v89 = vrot.slane %v88, 4
      %v90 = vadd.f32 %v88, %v89
      %v91 = vrot.slane %v90, 2
      %v92 = vadd.f32 %v90, %v91
      %v93 = vrot.slane %v92, 1
      %v94 = vadd.f32 %v92, %v93
      %s95 = vtos %v94
      %v96 = vstv %s95
      %vm97 = vcmask 0
      %98 = vst.msk [vmem:[#allocation8] sm:$0x1] %vm97, %v96
    $region25: #{tpu_custom_call.1} parent=1 // pred_fallthru
      _
    // Predicated region
    $region26: #{tpu_custom_call.1} parent=1 // pred_check
      _
    $region27: #{tpu_custom_call.1} parent=1 // pred_check_branch
      %100 = sbr.rel (0) target = $region29
    $region28: #{tpu_custom_call.1} parent=1 // pred_region
      %102 = vsyncadd [#allocation5], 0
      %s104 = sshll.u32 [#allocation8], 4
      %s105 = int_to_ptr.vmem [resolvable:$true] %s104
      %s106 = sshll.u32 %s2, 4
      %s107 = int_to_ptr.hbm [resolvable:$true] %s106
      %109 = dma.vmem_to_hbm [thread:$0]  %s105, 16, %s107, [#allocation5]
    $region29: #{tpu_custom_call.1} parent=1 // pred_fallthru
      _
    // Predicated region
    $region30: #{tpu_custom_call.1} parent=1 // pred_check
      _
    $region31: #{tpu_custom_call.1} parent=1 // pred_check_branch
      %111 = sbr.rel (0) target = $region33
    $region32: #{tpu_custom_call.1} parent=1 // pred_region
      %113 = dma.done [#allocation5], 16
    $region33: #{tpu_custom_call.1} parent=1 // pred_fallthru
      _
    %114 = vsyncpa [#allocation4], 1
    %115 = vsyncpa [#allocation7], 1
    %116 = vsyncpa [#allocation5], 1

</llo_original>
